<compile_context>
chip_gen: v7x
topology: tpu7x:2x2x1
jax: 0.10.0
libtpu: 0.0.40
codegen_flags: <defaults>
</compile_context>

<pallas_src>
import functools

import jax
import jax.numpy as jnp
from jax.experimental import pallas as pl
from jax.experimental.pallas import tpu as pltpu


# ----------------------------- configuration -------------------------------
CROP = 32          # stands in for the 512 of T.Resize(512)/T.CenterCrop(512)
PATCH = 8          # patch size for the synthetic patch-embed backbone
C_IN = 3           # RGB
P_PATCHES = (CROP // PATCH) ** 2          # 16 patches per image
F_PATCH = C_IN * PATCH * PATCH            # 192 features per patch
D_HIDDEN = 128                            # lane-aligned hidden width
D_EMBED = 128                             # lane-aligned synthetic CLIP dim
N_PROMPTS = 2                             # ("Good photo.", "Bad photo.")
LANES = 128                               # TPU lane width (score row width)


# ----------------------------- Pallas kernel --------------------------------
def _clipiqa_kernel(patch_ref, w1_ref, b1_ref, w2_ref, b2_ref, tdiff_ref,
                    scores_ref):
    """One grid step == one image (its P patches).

    patch_ref  : (1, P, F)  bf16   this image's flattened patches
    w1_ref     : (F, Dh)    bf16   patch embedding            (grid-resident)
    b1_ref     : (1, Dh)    f32                               (grid-resident)
    w2_ref     : (Dh, D)    bf16   projection to CLIP space   (grid-resident)
    b2_ref     : (1, D)     f32                               (grid-resident)
    tdiff_ref  : (1, D)     f32    logit_scale*(t_good_n - t_bad_n)
    scores_ref : (1, 1, 128) f32   score broadcast across one lane row
    """
    patches = patch_ref[0]                                            # (P, F)

    # patch-embed MLP: bf16 inputs, f32 accumulation on the MXU.
    h = jnp.dot(patches, w1_ref[...],
                preferred_element_type=jnp.float32) + b1_ref[...]     # (P, Dh)
    h = jnp.maximum(h, 0.0)

    # true per-image mean pool (sublane reduce; no O(B^2) pool matmul).
    pooled = jnp.mean(h, axis=0, keepdims=True)                       # (1, Dh)

    # projection to the CLIP embedding space.
    feats = jnp.dot(pooled.astype(jnp.bfloat16), w2_ref[...],
                    preferred_element_type=jnp.float32) + b2_ref[...]  # (1, D)

    # L2 normalize image features.
    img_n = feats * jax.lax.rsqrt(
        jnp.sum(feats * feats, axis=-1, keepdims=True) + 1e-12)       # (1, D)

    # softmax over the 2 antonym prompts == sigmoid of the scaled logit
    # difference; multiply + lane reduce runs on VPU/XLU (no N=1 MXU matmul).
    diff = jnp.sum(img_n * tdiff_ref[...], axis=-1, keepdims=True)    # (1, 1)

    # numerically stable sigmoid (logit_scale = 100 can overflow exp in f32).
    pos = 1.0 / (1.0 + jnp.exp(-jnp.abs(diff)))
    score = jnp.where(diff >= 0.0, pos, 1.0 - pos)                    # (1, 1)

    # lane-dense, unmasked store: broadcast across the 128-lane output row.
    scores_ref[...] = jnp.broadcast_to(score[None], scores_ref.shape)


# ----------------------------- kernel wrapper --------------------------------
def _clipiqa_fused(patches_bf16, w1_bf16, b1, w2_bf16, b2, tdiff):
    """patches_bf16: (B, P, F) bf16 -> scores (B,) f32."""
    B, P, F = patches_bf16.shape
    Dh = w1_bf16.shape[1]
    D = w2_bf16.shape[1]

    grid_spec = pltpu.PrefetchScalarGridSpec(
        num_scalar_prefetch=0,
        grid=(B,),
        in_specs=[
            pl.BlockSpec((1, P, F), lambda b: (b, 0, 0)),   # per-image patches
            pl.BlockSpec((F, Dh), lambda b: (0, 0)),        # resident weights
            pl.BlockSpec((1, Dh), lambda b: (0, 0)),
            pl.BlockSpec((Dh, D), lambda b: (0, 0)),
            pl.BlockSpec((1, D), lambda b: (0, 0)),
            pl.BlockSpec((1, D), lambda b: (0, 0)),
        ],
        out_specs=pl.BlockSpec((1, 1, LANES), lambda b: (b, 0, 0)),
    )

    scores_rows = pl.pallas_call(
        _clipiqa_kernel,
        out_shape=jax.ShapeDtypeStruct((B, 1, LANES), jnp.float32),
        grid_spec=grid_spec,
        compiler_params=pltpu.CompilerParams(
            # image axis is independent -> shard across v7x's 2 TensorCores.
            dimension_semantics=("parallel",),
            # explicit scoped-VMEM budget (safe on v5e/v6e/v7x; actual usage
            # here is far below it).
            vmem_limit_bytes=16 * 1024 * 1024,
        ),
    )(patches_bf16, w1_bf16, b1, w2_bf16, b2, tdiff)

    return scores_rows[:, 0, 0]                                       # (B,)


# ----------------------------- JAX glue --------------------------------------
def _resize_center_crop(x, size):
    """T.Resize(size) (smaller edge, bilinear) + T.CenterCrop(size) on NCHW."""
    b, c, h, w = x.shape
    if h <= w:
        nh, nw = size, max(size, int(round(w * size / h)))
    else:
        nh, nw = max(size, int(round(h * size / w))), size
    x = jax.image.resize(x, (b, c, nh, nw), method="bilinear")
    top = (nh - size) // 2
    left = (nw - size) // 2
    return x[:, :, top:top + size, left:left + size]


def _patchify(x, p):
    """(B, C, H, W) -> (B, num_patches, C*p*p), feature axis last."""
    b, c, h, w = x.shape
    gh, gw = h // p, w // p
    x = x.reshape(b, c, gh, p, gw, p)
    x = x.transpose(0, 2, 4, 1, 3, 5)
    return x.reshape(b, gh * gw, c * p * p)


def _mse(pred, target):
    return jnp.mean((pred - target) ** 2)


def init_params(key):
    k1, k2, k3 = jax.random.split(key, 3)
    w1 = jax.random.normal(k1, (F_PATCH, D_HIDDEN), jnp.float32) / jnp.sqrt(
        jnp.float32(F_PATCH))
    b1 = jnp.zeros((1, D_HIDDEN), jnp.float32)
    w2 = jax.random.normal(k2, (D_HIDDEN, D_EMBED), jnp.float32) / jnp.sqrt(
        jnp.float32(D_HIDDEN))
    b2 = jnp.zeros((1, D_EMBED), jnp.float32)
    # (2, D) antonym-prompt text features.  Contract: row 0 == "Good photo.",
    # row 1 == "Bad photo."  (score is the softmax probability of row 0.)
    text_feats = jax.random.normal(k3, (N_PROMPTS, D_EMBED), jnp.float32)
    logit_scale = jnp.float32(100.0)                 # CLIP exp(logit_scale)
    return dict(w1=w1, b1=b1, w2=w2, b2=b2,
                text_feats=text_feats, logit_scale=logit_scale)


def _text_diff_vector(text_feats, logit_scale):
    """Precompute logit_scale * (t_good_n - t_bad_n) as a (1, D) f32 row."""
    assert text_feats.shape[0] == N_PROMPTS
    txt_n = text_feats * jax.lax.rsqrt(
        jnp.sum(text_feats * text_feats, axis=-1, keepdims=True) + 1e-12)
    return (logit_scale * (txt_n[0] - txt_n[1])).reshape(1, D_EMBED)


def clipiqa_forward(params, batch):
    """Mirrors CLIPIQA.forward."""
    x, t, index, gt = (batch["images"], batch["moss"],
                       batch["indexs"], batch["mossgt"])
    del index  # unpacked but unused, as in the reference module

    x = _resize_center_crop(x.astype(jnp.float32), CROP)
    patches = _patchify(x, PATCH).astype(jnp.bfloat16)          # (B, P, F)

    tdiff = _text_diff_vector(params["text_feats"], params["logit_scale"])

    scores = _clipiqa_fused(
        patches,
        params["w1"].astype(jnp.bfloat16), params["b1"],
        params["w2"].astype(jnp.bfloat16), params["b2"],
        tdiff)                                                   # (B,)

    # loss = F.mse_loss(scores, target=t), computed outside net() as in the
    # reference module.
    lossfun = functools.partial(_mse, scores)
    loss = lossfun(t.astype(jnp.float32))

    logdict = {
        "mse_score": [scores, gt],
        "rmse_score": [scores, gt],
        "mean_loss": [jnp.zeros_like(loss), jax.lax.stop_gradient(loss)],
        "srcc": [scores, gt],
        "plcc": [scores, gt],
    }
    return {"scores": scores, "loss": loss, "logdict": logdict,
            "lossfun": lossfun}


# ----------------------------- pure-JAX reference -----------------------------
def _clipiqa_reference_scores(params, batch):
    """Same math as the kernel (same bf16 casts), via plain XLA ops."""
    x = _resize_center_crop(batch["images"].astype(jnp.float32), CROP)
    patches = _patchify(x, PATCH).astype(jnp.bfloat16)
    w1 = params["w1"].astype(jnp.bfloat16)
    w2 = params["w2"].astype(jnp.bfloat16)
    tdiff = _text_diff_vector(params["text_feats"], params["logit_scale"])

    h = jnp.einsum("bpf,fh->bph", patches, w1,
                   preferred_element_type=jnp.float32) + params["b1"]
    h = jnp.maximum(h, 0.0)
    pooled = jnp.mean(h, axis=1)                                 # (B, Dh)
    feats = jnp.einsum("bh,hd->bd", pooled.astype(jnp.bfloat16), w2,
                       preferred_element_type=jnp.float32) + params["b2"]
    img_n = feats * jax.lax.rsqrt(
        jnp.sum(feats * feats, axis=-1, keepdims=True) + 1e-12)
    diff = jnp.sum(img_n * tdiff, axis=-1)                       # (B,)
    return jax.nn.sigmoid(diff)


# ----------------------------- main ------------------------------------------
if __name__ == "__main__":
    key = jax.random.PRNGKey(0)
    k_img, k_t, k_gt, k_param = jax.random.split(key, 4)

    B = 2
    images = jax.random.uniform(k_img, (B, C_IN, 16, 16), jnp.float32)
    moss = jax.random.uniform(k_t, (B,), jnp.float32)
    mossgt = jax.random.uniform(k_gt, (B,), jnp.float32)
    indexs = jnp.arange(B, dtype=jnp.int32)

    params = init_params(k_param)
    batch = {"images": images, "moss": moss, "indexs": indexs, "mossgt": mossgt}

    out = clipiqa_forward(params, batch)
    scores = jax.block_until_ready(out["scores"])
    loss = jax.block_until_ready(out["loss"])

    assert scores.shape == (B,)
    assert loss.shape == ()
    assert bool(jnp.all(jnp.isfinite(scores))) and bool(jnp.isfinite(loss))
    assert bool(jnp.all((scores >= 0.0) & (scores <= 1.0)))

    ref_scores = jax.block_until_ready(_clipiqa_reference_scores(params, batch))
    assert bool(jnp.all(jnp.abs(scores - ref_scores) < 5e-2)), (scores, ref_scores)

    print("KERNEL_OK")
</pallas_src>

<mosaic_0001>
module attributes {stable_mosaic.version = 11 : i64} {
  func.func @_clipiqa_kernel(%arg0: i32, %arg1: memref<1x16x192xbf16, #tpu.memory_space<vmem>>, %arg2: memref<192x128xbf16, #tpu.memory_space<vmem>>, %arg3: memref<1x128xf32, #tpu.memory_space<vmem>>, %arg4: memref<128x128xbf16, #tpu.memory_space<vmem>>, %arg5: memref<1x128xf32, #tpu.memory_space<vmem>>, %arg6: memref<1x128xf32, #tpu.memory_space<vmem>>, %arg7: memref<1x1x128xf32, #tpu.memory_space<vmem>>) attributes {dimension_semantics = [#tpu.dimension_semantics<parallel>], iteration_bounds = array<i64: 2>, scalar_prefetch = 0 : i64, scratch_operands = 0 : i64, tpu.core_type = #tpu.core_type<tc>, window_params = [{transform_indices = @transform_0, window_bounds = array<i64: 1, 16, 192>}, {pipeline_mode = #tpu.pipeline_mode<synchronous>, transform_indices = @transform_1, window_bounds = array<i64: 192, 128>}, {pipeline_mode = #tpu.pipeline_mode<synchronous>, transform_indices = @transform_2, window_bounds = array<i64: 1, 128>}, {pipeline_mode = #tpu.pipeline_mode<synchronous>, transform_indices = @transform_3, window_bounds = array<i64: 128, 128>}, {pipeline_mode = #tpu.pipeline_mode<synchronous>, transform_indices = @transform_4, window_bounds = array<i64: 1, 128>}, {pipeline_mode = #tpu.pipeline_mode<synchronous>, transform_indices = @transform_5, window_bounds = array<i64: 1, 128>}, {transform_indices = @transform_6, window_bounds = array<i64: 1, 1, 128>}]} {
    %c0 = arith.constant 0 : index
    %c0_0 = arith.constant 0 : index
    %c0_1 = arith.constant 0 : index
    %0 = vector.load %arg1[%c0, %c0_0, %c0_1] : memref<1x16x192xbf16, #tpu.memory_space<vmem>>, vector<1x16x192xbf16>
    %1 = vector.shape_cast %0 : vector<1x16x192xbf16> to vector<16x192xbf16>
    %c0_2 = arith.constant 0 : index
    %c0_3 = arith.constant 0 : index
    %2 = vector.load %arg2[%c0_2, %c0_3] : memref<192x128xbf16, #tpu.memory_space<vmem>>, vector<192x128xbf16>
    %cst = arith.constant dense<0.000000e+00> : vector<16x128xf32>
    %3 = tpu.matmul %1, %2, %cst {dimension_numbers = #tpu.dot_dimension_numbers<[1], [0], [0], [1], [0, 0, 1, 1], [], []>} : vector<16x192xbf16>, vector<192x128xbf16>, vector<16x128xf32> -> vector<16x128xf32>
    %c0_4 = arith.constant 0 : index
    %c0_5 = arith.constant 0 : index
    %4 = vector.load %arg3[%c0_4, %c0_5] : memref<1x128xf32, #tpu.memory_space<vmem>>, vector<1x128xf32>
    %5 = vector.broadcast %4 : vector<1x128xf32> to vector<16x128xf32>
    %6 = arith.addf %3, %5 : vector<16x128xf32>
    %cst_6 = arith.constant 0.000000e+00 : f32
    %7 = vector.broadcast %cst_6 : f32 to vector<16x128xf32>
    %8 = arith.maximumf %6, %7 : vector<16x128xf32>
    %cst_7 = arith.constant dense<0.000000e+00> : vector<128xf32>
    %9 = vector.multi_reduction <add>, %8, %cst_7 [0] : vector<16x128xf32> to vector<128xf32>
    %10 = vector.shape_cast %9 : vector<128xf32> to vector<1x128xf32>
    %cst_8 = arith.constant 1.600000e+01 : f32
    %11 = vector.broadcast %cst_8 : f32 to vector<1x128xf32>
    %12 = arith.divf %10, %11 : vector<1x128xf32>
    %13 = arith.truncf %12 : vector<1x128xf32> to vector<1x128xbf16>
    %c0_9 = arith.constant 0 : index
    %c0_10 = arith.constant 0 : index
    %14 = vector.load %arg4[%c0_9, %c0_10] : memref<128x128xbf16, #tpu.memory_space<vmem>>, vector<128x128xbf16>
    %cst_11 = arith.constant dense<0.000000e+00> : vector<1x128xf32>
    %15 = tpu.matmul %13, %14, %cst_11 {dimension_numbers = #tpu.dot_dimension_numbers<[1], [0], [0], [1], [0, 0, 1, 1], [], []>} : vector<1x128xbf16>, vector<128x128xbf16>, vector<1x128xf32> -> vector<1x128xf32>
    %c0_12 = arith.constant 0 : index
    %c0_13 = arith.constant 0 : index
    %16 = vector.load %arg5[%c0_12, %c0_13] : memref<1x128xf32, #tpu.memory_space<vmem>>, vector<1x128xf32>
    %17 = arith.addf %15, %16 : vector<1x128xf32>
    %18 = arith.mulf %17, %17 : vector<1x128xf32>
    %cst_14 = arith.constant dense<0.000000e+00> : vector<1xf32>
    %19 = vector.multi_reduction <add>, %18, %cst_14 [1] : vector<1x128xf32> to vector<1xf32>
    %20 = vector.shape_cast %19 : vector<1xf32> to vector<1x1xf32>
    %cst_15 = arith.constant 9.99999996E-13 : f32
    %21 = vector.broadcast %cst_15 : f32 to vector<1x1xf32>
    %22 = arith.addf %20, %21 : vector<1x1xf32>
    %23 = math.rsqrt %22 : vector<1x1xf32>
    %24 = vector.broadcast %23 : vector<1x1xf32> to vector<1x128xf32>
    %25 = arith.mulf %17, %24 : vector<1x128xf32>
    %c0_16 = arith.constant 0 : index
    %c0_17 = arith.constant 0 : index
    %26 = vector.load %arg6[%c0_16, %c0_17] : memref<1x128xf32, #tpu.memory_space<vmem>>, vector<1x128xf32>
    %27 = arith.mulf %25, %26 : vector<1x128xf32>
    %cst_18 = arith.constant dense<0.000000e+00> : vector<1xf32>
    %28 = vector.multi_reduction <add>, %27, %cst_18 [1] : vector<1x128xf32> to vector<1xf32>
    %29 = vector.shape_cast %28 : vector<1xf32> to vector<1x1xf32>
    %30 = math.absf %29 : vector<1x1xf32>
    %cst_19 = arith.constant 0.000000e+00 : f32
    %31 = vector.broadcast %cst_19 : f32 to vector<1x1xf32>
    %32 = arith.subf %31, %30 : vector<1x1xf32>
    %33 = math.exp %32 : vector<1x1xf32>
    %cst_20 = arith.constant 1.000000e+00 : f32
    %34 = vector.broadcast %cst_20 : f32 to vector<1x1xf32>
    %35 = arith.addf %34, %33 : vector<1x1xf32>
    %cst_21 = arith.constant 1.000000e+00 : f32
    %36 = vector.broadcast %cst_21 : f32 to vector<1x1xf32>
    %37 = arith.divf %36, %35 : vector<1x1xf32>
    %cst_22 = arith.constant 0.000000e+00 : f32
    %38 = vector.broadcast %cst_22 : f32 to vector<1x1xf32>
    %39 = arith.cmpf oge, %29, %38 : vector<1x1xf32>
    %cst_23 = arith.constant 1.000000e+00 : f32
    %40 = vector.broadcast %cst_23 : f32 to vector<1x1xf32>
    %41 = arith.subf %40, %37 : vector<1x1xf32>
    %42 = arith.select %39, %37, %41 : vector<1x1xi1>, vector<1x1xf32>
    %43 = vector.shape_cast %42 : vector<1x1xf32> to vector<1x1x1xf32>
    %44 = vector.shape_cast %43 : vector<1x1x1xf32> to vector<1x1x1xf32>
    %45 = vector.broadcast %44 : vector<1x1x1xf32> to vector<1x1x128xf32>
    %c0_24 = arith.constant 0 : index
    %c0_25 = arith.constant 0 : index
    %c0_26 = arith.constant 0 : index
    %46 = vector.load %arg7[%c0_24, %c0_25, %c0_26] : memref<1x1x128xf32, #tpu.memory_space<vmem>>, vector<1x1x128xf32>
    tpu.vector_store %arg7[%c0_24, %c0_25, %c0_26], %45 {strides = array<i32>} : memref<1x1x128xf32, #tpu.memory_space<vmem>>, vector<1x1x128xf32>,
    return
  }
  func.func @transform_0(%arg0: i32) -> (i32, i32, i32) {
    %c0_i32 = arith.constant 0 : i32
    %c0_i32_0 = arith.constant 0 : i32
    %c0_i32_1 = arith.constant 0 : i32
    return %arg0, %c0_i32, %c0_i32_0 : i32, i32, i32
  }
  func.func @transform_1(%arg0: i32) -> (i32, i32) {
    %c0_i32 = arith.constant 0 : i32
    %c0_i32_0 = arith.constant 0 : i32
    %c0_i32_1 = arith.constant 0 : i32
    return %c0_i32, %c0_i32_0 : i32, i32
  }
  func.func @transform_2(%arg0: i32) -> (i32, i32) {
    %c0_i32 = arith.constant 0 : i32
    %c0_i32_0 = arith.constant 0 : i32
    %c0_i32_1 = arith.constant 0 : i32
    return %c0_i32, %c0_i32_0 : i32, i32
  }
  func.func @transform_3(%arg0: i32) -> (i32, i32) {
    %c0_i32 = arith.constant 0 : i32
    %c0_i32_0 = arith.constant 0 : i32
    %c0_i32_1 = arith.constant 0 : i32
    return %c0_i32, %c0_i32_0 : i32, i32
  }
  func.func @transform_4(%arg0: i32) -> (i32, i32) {
    %c0_i32 = arith.constant 0 : i32
    %c0_i32_0 = arith.constant 0 : i32
    %c0_i32_1 = arith.constant 0 : i32
    return %c0_i32, %c0_i32_0 : i32, i32
  }
  func.func @transform_5(%arg0: i32) -> (i32, i32) {
    %c0_i32 = arith.constant 0 : i32
    %c0_i32_0 = arith.constant 0 : i32
    %c0_i32_1 = arith.constant 0 : i32
    return %c0_i32, %c0_i32_0 : i32, i32
  }
  func.func @transform_6(%arg0: i32) -> (i32, i32, i32) {
    %c0_i32 = arith.constant 0 : i32
    %c0_i32_0 = arith.constant 0 : i32
    %c0_i32_1 = arith.constant 0 : i32
    return %arg0, %c0_i32, %c0_i32_0 : i32, i32, i32
  }
}

</mosaic_0001>

<llo_original>
// kernel: tpu_custom_call.1
$region0: #{tpu_custom_call.1}
  #allocation0 [shape = 'u32[]', space=smem, size = 0x4, offset = 0x4, fixed_abs, tag = 'smem constant byte address 0x4 - core index']
  #allocation1 [shape = 'u32[144,128]{1,0:T(1,128)}', space=vmem, size = 0x12000, scoped, tag = 'internal scratch']
  %s0 = inlined_call_operand.hbm [shape: bf16[2,16,192], index: 0, kind: input, shape index: {}]
  %s1 = inlined_call_operand.hbm [shape: bf16[192,128], index: 1, kind: input, shape index: {}]
  %s2 = inlined_call_operand.vmem [shape: f32[1,128], index: 2, kind: input, shape index: {}]
  %s3 = inlined_call_operand.hbm [shape: bf16[128,128], index: 3, kind: input, shape index: {}]
  %s4 = inlined_call_operand.vmem [shape: f32[1,128], index: 4, kind: input, shape index: {}]
  %s5 = inlined_call_operand.vmem [shape: f32[1,128], index: 5, kind: input, shape index: {}]
  %s6 = inlined_call_operand.hbm [shape: f32[2,1,128], index: 6, kind: output, shape index: {}]
  %s7 = sld [smem:[#allocation0]]
  $region69: #{tpu_custom_call.1} parent=0
    _
  %s9 = ssub.s32 1, %s7
  %s10 = scalar_select 0, %s9, %s7
  $region1: #{tpu_custom_call.1} parent=0
    #allocation2 [shape = 'u8[16384]{0}', space=vmem, size = 0x4000, scoped, tag = 'input window, operand 0']
    #allocation3 [shape = 's32[2]{0}', space=sflag, size = 0x8, scoped, tag = 'scoped memory for tpu_custom_call.1']
    #allocation4 [shape = 's32[2]{0}', space=sflag, size = 0x8, scoped, tag = 'scoped memory for tpu_custom_call.1']
    #allocation5 [shape = 'u8[49152]{0}', space=vmem, size = 0xc000, scoped, tag = 'input window, operand 1, single buffered']
    #allocation6 [shape = 's32[1]{0}', space=sflag, size = 0x4, scoped, tag = 'scoped memory for tpu_custom_call.1']
    #allocation7 [shape = 'u8[32768]{0}', space=vmem, size = 0x8000, scoped, tag = 'input window, operand 3, single buffered']
    #allocation8 [shape = 'u8[1024]{0}', space=vmem, size = 0x400, scoped, tag = 'output window, operand 0']
    %11 = vsyncpa [#allocation3], 0
    %s12 = scalar_lea.sflag [#allocation3], 1
    %13 = vsyncpa %s12, 0
    %14 = vsyncpa [#allocation6], 0
    %15 = vsyncpa [#allocation4], 0
    %s16 = scalar_lea.sflag [#allocation4], 1
    %17 = vsyncpa %s16, 0
    loop: start=0, step=1, limit=4
    $region2: #{tpu_custom_call.1} parent=1 // loop_pre_header
      _
    $region3: #{tpu_custom_call.1} parent=1 // loop_header
      %s19 = sphi 0, %s23
      %p20 = scmp.ge.s32.totalorder %s19, 4
      %s29 = sphi 0, %s31
      %s32 = sphi 0, %s29
      %s33 = sphi 0, %s32
      %s49 = sphi 0, %s33
      %s53 = sphi 0, %s53
      %s55 = sphi 0, %s53
      %s56 = sphi 0, %s55
      %s70 = sphi 0, %s56
      %s74 = sphi 0, %s74
      %s76 = sphi 0, %s74
      %s77 = sphi 0, %s76
      %s91 = sphi 0, %s77
      %s95 = sphi 0, %s95
      %s97 = sphi 0, %s95
      %s98 = sphi 0, %s97
      %s112 = sphi 0, %s98
      %s116 = sphi 0, %s116
      %s118 = sphi 0, %s116
      %s119 = sphi 0, %s118
      %s133 = sphi 0, %s119
      %s137 = sphi 0, %s137
      %s139 = sphi 0, %s137
      %s140 = sphi 0, %s139
      %s154 = sphi 0, %s140
      %s160 = sphi 0, %s162
      %s163 = sphi 0, %s160
      %s164 = sphi 0, %s163
      %s180 = sphi 0, %s164
    $region4: #{tpu_custom_call.1} parent=1 // loop_header_branch
      %22 = sbr.rel (%p20) target = $region8
    $region5: #{tpu_custom_call.1} parent=1 // loop_body
      %s24 = ssub.s32 %s19, 1
      %s25 = ssub.s32 %s19, 2
      %s26 = sadd.s32 %s19, 1
      %s27 = ssub.s32 %s19, %s26
      %p28 = scmp.eq.s32.totalorder %s27, 0
      %s30 = sadd.s32 %s29, 1
      %s31 = scalar_select %p28, %s29, %s30
      %p34 = pneg %p28
      %p35 = scmp.eq.s32.totalorder %s19, 1
      %p36 = por %p34, %p35
      %p37 = scmp.ne.s32.totalorder %s29, %s32
      %p38 = scmp.eq.s32.totalorder %s19, 0
      %p39 = por %p37, %p38
      %p40 = scmp.ne.s32.totalorder %s29, %s32
      %p41 = scmp.eq.s32.totalorder %s24, 1
      %p42 = por %p40, %p41
      %p43 = scmp.ne.s32.totalorder %s32, %s33
      %p44 = scmp.eq.s32.totalorder %s24, 0
      %p45 = por %p43, %p44
      %p46 = scmp.ne.s32.totalorder %s32, %s33
      %p47 = scmp.eq.s32.totalorder %s25, 1
      %p48 = por %p46, %p47
      %p50 = scmp.ne.s32.totalorder %s33, %s49
      %p51 = scmp.eq.s32.totalorder %s25, 0
      %p52 = por %p50, %p51
      %s54 = sadd.s32 %s53, 1
      %p57 = scmp.eq.s32.totalorder %s19, 1
      %p58 = scmp.ne.s32.totalorder %s53, %s55
      %p59 = scmp.eq.s32.totalorder %s19, 0
      %p60 = por %p58, %p59
      %p61 = scmp.ne.s32.totalorder %s53, %s55
      %p62 = scmp.eq.s32.totalorder %s24, 1
      %p63 = por %p61, %p62
      %p64 = scmp.ne.s32.totalorder %s55, %s56
      %p65 = scmp.eq.s32.totalorder %s24, 0
      %p66 = por %p64, %p65
      %p67 = scmp.ne.s32.totalorder %s55, %s56
      %p68 = scmp.eq.s32.totalorder %s25, 1
      %p69 = por %p67, %p68
      %p71 = scmp.ne.s32.totalorder %s56, %s70
      %p72 = scmp.eq.s32.totalorder %s25, 0
      %p73 = por %p71, %p72
      %s75 = sadd.s32 %s74, 1
      %p78 = scmp.eq.s32.totalorder %s19, 1
      %p79 = scmp.ne.s32.totalorder %s74, %s76
      %p80 = scmp.eq.s32.totalorder %s19, 0
      %p81 = por %p79, %p80
      %p82 = scmp.ne.s32.totalorder %s74, %s76
      %p83 = scmp.eq.s32.totalorder %s24, 1
      %p84 = por %p82, %p83
      %p85 = scmp.ne.s32.totalorder %s76, %s77
      %p86 = scmp.eq.s32.totalorder %s24, 0
      %p87 = por %p85, %p86
      %p88 = scmp.ne.s32.totalorder %s76, %s77
      %p89 = scmp.eq.s32.totalorder %s25, 1
      %p90 = por %p88, %p89
      %p92 = scmp.ne.s32.totalorder %s77, %s91
      %p93 = scmp.eq.s32.totalorder %s25, 0
      %p94 = por %p92, %p93
      %s96 = sadd.s32 %s95, 1
      %p99 = scmp.eq.s32.totalorder %s19, 1
      %p100 = scmp.ne.s32.totalorder %s95, %s97
      %p101 = scmp.eq.s32.totalorder %s19, 0
      %p102 = por %p100, %p101
      %p103 = scmp.ne.s32.totalorder %s95, %s97
      %p104 = scmp.eq.s32.totalorder %s24, 1
      %p105 = por %p103, %p104
      %p106 = scmp.ne.s32.totalorder %s97, %s98
      %p107 = scmp.eq.s32.totalorder %s24, 0
      %p108 = por %p106, %p107
      %p109 = scmp.ne.s32.totalorder %s97, %s98
      %p110 = scmp.eq.s32.totalorder %s25, 1
      %p111 = por %p109, %p110
      %p113 = scmp.ne.s32.totalorder %s98, %s112
      %p114 = scmp.eq.s32.totalorder %s25, 0
      %p115 = por %p113, %p114
      %s117 = sadd.s32 %s116, 1
      %p120 = scmp.eq.s32.totalorder %s19, 1
      %p121 = scmp.ne.s32.totalorder %s116, %s118
      %p122 = scmp.eq.s32.totalorder %s19, 0
      %p123 = por %p121, %p122
      %p124 = scmp.ne.s32.totalorder %s116, %s118
      %p125 = scmp.eq.s32.totalorder %s24, 1
      %p126 = por %p124, %p125
      %p127 = scmp.ne.s32.totalorder %s118, %s119
      %p128 = scmp.eq.s32.totalorder %s24, 0
      %p129 = por %p127, %p128
      %p130 = scmp.ne.s32.totalorder %s118, %s119
      %p131 = scmp.eq.s32.totalorder %s25, 1
      %p132 = por %p130, %p131
      %p134 = scmp.ne.s32.totalorder %s119, %s133
      %p135 = scmp.eq.s32.totalorder %s25, 0
      %p136 = por %p134, %p135
      %s138 = sadd.s32 %s137, 1
      %p141 = scmp.eq.s32.totalorder %s19, 1
      %p142 = scmp.ne.s32.totalorder %s137, %s139
      %p143 = scmp.eq.s32.totalorder %s19, 0
      %p144 = por %p142, %p143
      %p145 = scmp.ne.s32.totalorder %s137, %s139
      %p146 = scmp.eq.s32.totalorder %s24, 1
      %p147 = por %p145, %p146
      %p148 = scmp.ne.s32.totalorder %s139, %s140
      %p149 = scmp.eq.s32.totalorder %s24, 0
      %p150 = por %p148, %p149
      %p151 = scmp.ne.s32.totalorder %s139, %s140
      %p152 = scmp.eq.s32.totalorder %s25, 1
      %p153 = por %p151, %p152
      %p155 = scmp.ne.s32.totalorder %s140, %s154
      %p156 = scmp.eq.s32.totalorder %s25, 0
      %p157 = por %p155, %p156
      %s158 = ssub.s32 %s19, %s26
      %p159 = scmp.eq.s32.totalorder %s158, 0
      %s161 = sadd.s32 %s160, 1
      %s162 = scalar_select %p159, %s160, %s161
      %p165 = pneg %p159
      %p166 = scmp.eq.s32.totalorder %s19, 1
      %p167 = por %p165, %p166
      %p168 = scmp.ne.s32.totalorder %s160, %s163
      %p169 = scmp.eq.s32.totalorder %s19, 0
      %p170 = por %p168, %p169
      %p171 = scmp.ne.s32.totalorder %s160, %s163
      %p172 = scmp.eq.s32.totalorder %s24, 1
      %p173 = por %p171, %p172
      %p174 = scmp.ne.s32.totalorder %s163, %s164
      %p175 = scmp.eq.s32.totalorder %s24, 0
      %p176 = por %p174, %p175
      %p177 = scmp.ne.s32.totalorder %s163, %s164
      %p178 = scmp.eq.s32.totalorder %s25, 1
      %p179 = por %p177, %p178
      %p181 = scmp.ne.s32.totalorder %s164, %s180
      %p182 = scmp.eq.s32.totalorder %s25, 0
      %p183 = por %p181, %p182
      %p184 = scmp.le.s32.totalorder 1, %s19
      %p185 = scmp.lt.s32.totalorder %s19, 3
      %p186 = pnand %p184, %p185
      %p187 = pneg %p186
      // Predicated region
      $region9: #{tpu_custom_call.1} parent=5 // pred_check
        _
      $region10: #{tpu_custom_call.1} parent=5 // pred_check_branch
        %189 = sbr.rel (%p186) target = $region12
      $region11: #{tpu_custom_call.1} parent=5 // pred_region
        %s190 = ssub.s32 %s19, 1
        // Predicated region
        $region13: #{tpu_custom_call.1} parent=11 // pred_check
          %p191 = pneg %p66
        $region14: #{tpu_custom_call.1} parent=11 // pred_check_branch
          %193 = sbr.rel (%p191) target = $region16
        $region15: #{tpu_custom_call.1} parent=11 // pred_region
          %s195 = ssub.s32 1536, 1536
          %196 = vsyncadd [#allocation6], %s195
          %s197 = sshll.u32 [#allocation5], 4
          %s198 = int_to_ptr.vmem [resolvable:$true] %s197
          %203 = dma.hbm_to_vmem [thread:$0]  %s1, 1536, %s198, [#allocation6], 64, 64, 4
        $region16: #{tpu_custom_call.1} parent=11 // pred_fallthru
          _
        // Predicated region
        $region17: #{tpu_custom_call.1} parent=11 // pred_check
          %p204 = pneg %p87
        $region18: #{tpu_custom_call.1} parent=11 // pred_check_branch
          %206 = sbr.rel (%p204) target = $region20
        $region19: #{tpu_custom_call.1} parent=11 // pred_region
          _
        $region20: #{tpu_custom_call.1} parent=11 // pred_fallthru
          _
        // Predicated region
        $region21: #{tpu_custom_call.1} parent=11 // pred_check
          %p207 = pneg %p108
        $region22: #{tpu_custom_call.1} parent=11 // pred_check_branch
          %209 = sbr.rel (%p207) target = $region24
        $region23: #{tpu_custom_call.1} parent=11 // pred_region
          %s211 = ssub.s32 1024, 1024
          %212 = vsyncadd [#allocation6], %s211
          %s213 = sshll.u32 [#allocation7], 4
          %s214 = int_to_ptr.vmem [resolvable:$true] %s213
          %219 = dma.hbm_to_vmem [thread:$0]  %s3, 1024, %s214, [#allocation6], 64, 64, 4
        $region24: #{tpu_custom_call.1} parent=11 // pred_fallthru
          _
        // Predicated region
        $region25: #{tpu_custom_call.1} parent=11 // pred_check
          %p220 = pneg %p129
        $region26: #{tpu_custom_call.1} parent=11 // pred_check_branch
          %222 = sbr.rel (%p220) target = $region28
        $region27: #{tpu_custom_call.1} parent=11 // pred_region
          _
        $region28: #{tpu_custom_call.1} parent=11 // pred_fallthru
          _
        // Predicated region
        $region29: #{tpu_custom_call.1} parent=11 // pred_check
          %p223 = pneg %p150
        $region30: #{tpu_custom_call.1} parent=11 // pred_check_branch
          %225 = sbr.rel (%p223) target = $region32
        $region31: #{tpu_custom_call.1} parent=11 // pred_region
          _
        $region32: #{tpu_custom_call.1} parent=11 // pred_fallthru
          _
      $region12: #{tpu_custom_call.1} parent=5 // pred_fallthru
        _
      %p226 = scmp.lt.s32.totalorder %s19, 2
      // Predicated region
      $region33: #{tpu_custom_call.1} parent=5 // pred_check
        %p227 = pneg %p226
      $region34: #{tpu_custom_call.1} parent=5 // pred_check_branch
        %229 = sbr.rel (%p227) target = $region36
      $region35: #{tpu_custom_call.1} parent=5 // pred_region
        // Predicated region
        $region37: #{tpu_custom_call.1} parent=35 // pred_check
          %p230 = pneg %p39
        $region38: #{tpu_custom_call.1} parent=35 // pred_check_branch
          %232 = sbr.rel (%p230) target = $region40
        $region39: #{tpu_custom_call.1} parent=35 // pred_region
          %s233 = sand.u32 %s29, 1
          %s234 = scalar_lea.sflag [#allocation3], %s233
          %s235 = sand.u32 %s29, 1
          %s236 = smul.addr %s235, 16
          %s237 = scalar_lea.vmem [#allocation2], %s236
          %s239 = ssub.s32 256, 256
          %240 = vsyncadd %s234, %s239
          %s241 = smul.addr %s19, 4
          %s242 = smul.addr %s241, 64
          %s243 = scalar_lea.hbm %s0, %s242
          %s244 = sshll.u32 %s237, 4
          %s245 = int_to_ptr.vmem [resolvable:$true] %s244
          %250 = dma.hbm_to_vmem [thread:$0]  %s243, 256, %s245, %s234, 128, 128, 8
        $region40: #{tpu_custom_call.1} parent=35 // pred_fallthru
          _
      $region36: #{tpu_custom_call.1} parent=5 // pred_fallthru
        _
      %p251 = scmp.le.s32.totalorder 1, %s19
      %p252 = scmp.lt.s32.totalorder %s19, 3
      %p253 = pnand %p251, %p252
      %p254 = pneg %p253
      // Predicated region
      $region41: #{tpu_custom_call.1} parent=5 // pred_check
        _
      $region42: #{tpu_custom_call.1} parent=5 // pred_check_branch
        %256 = sbr.rel (%p253) target = $region44
      $region43: #{tpu_custom_call.1} parent=5 // pred_region
        %s257 = ssub.s32 %s19, 1
        %s258 = sand.u32 %s32, 1
        %s259 = scalar_lea.sflag [#allocation3], %s258
        %s260 = sand.u32 %s32, 1
        %s261 = smul.addr %s260, 16
        %s262 = scalar_lea.vmem [#allocation2], %s261
        // Predicated region
        $region45: #{tpu_custom_call.1} parent=43 // pred_check
          %p263 = pneg %p45
        $region46: #{tpu_custom_call.1} parent=43 // pred_check_branch
          %265 = sbr.rel (%p263) target = $region48
        $region47: #{tpu_custom_call.1} parent=43 // pred_region
          %266 = dma.done %s259, 256
        $region48: #{tpu_custom_call.1} parent=43 // pred_fallthru
          _
        // Predicated region
        $region49: #{tpu_custom_call.1} parent=43 // pred_check
          %p267 = pneg %p66
        $region50: #{tpu_custom_call.1} parent=43 // pred_check_branch
          %269 = sbr.rel (%p267) target = $region52
        $region51: #{tpu_custom_call.1} parent=43 // pred_region
          %270 = dma.done [#allocation6], 1536
        $region52: #{tpu_custom_call.1} parent=43 // pred_fallthru
          _
        // Predicated region
        $region53: #{tpu_custom_call.1} parent=43 // pred_check
          %p271 = pneg %p108
        $region54: #{tpu_custom_call.1} parent=43 // pred_check_branch
          %273 = sbr.rel (%p271) target = $region56
        $region55: #{tpu_custom_call.1} parent=43 // pred_region
          %274 = dma.done [#allocation6], 1024
        $region56: #{tpu_custom_call.1} parent=43 // pred_fallthru
          _
        %s275 = sand.u32 %s32, 1
        %s276 = scalar_lea.sflag [#allocation3], %s275
        %s277 = sand.u32 %s32, 1
        %s278 = smul.addr %s277, 16
        %s279 = scalar_lea.vmem [#allocation2], %s278
        %p280 = pneg %p45
        %p281 = pneg %p42
        %p282 = pneg %p66
        %p283 = pneg %p63
        %p284 = pneg %p87
        %p285 = pneg %p84
        %p286 = pneg %p108
        %p287 = pneg %p105
        %p288 = pneg %p129
        %p289 = pneg %p126
        %p290 = pneg %p150
        %p291 = pneg %p147
        %p292 = pneg %p176
        %p293 = pneg %p173
        %s294 = sand.u32 %s163, 1
        %s295 = scalar_lea.sflag [#allocation4], %s294
        %s296 = sand.u32 %s163, 1
        %s297 = scalar_lea.vmem [#allocation8], %s296
        %v299 = vld [vmem:[%s262] sm:$0xff]
        %v300 = vld [vmem:[%s262 + $0x8] sm:$0xff]
        %v301 = vld [vmem:[#allocation5] sm:$0xf]
        %v302 = vld [vmem:[#allocation5 + $0x4] sm:$0xf]
        %v303 = vld [vmem:[#allocation5 + $0x8] sm:$0xf]
        %v304 = vld [vmem:[#allocation5 + $0xc] sm:$0xf]
        %v305 = vld [vmem:[#allocation5 + $0x10] sm:$0xf]
        %v306 = vld [vmem:[#allocation5 + $0x14] sm:$0xf]
        %v307 = vld [vmem:[#allocation5 + $0x18] sm:$0xf]
        %v308 = vld [vmem:[#allocation5 + $0x1c] sm:$0xf]
        %v309 = vld [vmem:[#allocation5 + $0x20] sm:$0xf]
        %v310 = vld [vmem:[#allocation5 + $0x24] sm:$0xf]
        %v311 = vld [vmem:[#allocation5 + $0x28] sm:$0xf]
        %v312 = vld [vmem:[#allocation5 + $0x2c] sm:$0xf]
        %v313 = vld [vmem:[#allocation5 + $0x30] sm:$0xf]
        %v314 = vld [vmem:[#allocation5 + $0x34] sm:$0xf]
        %v315 = vld [vmem:[#allocation5 + $0x38] sm:$0xf]
        %v316 = vld [vmem:[#allocation5 + $0x3c] sm:$0xf]
        %v317 = vld [vmem:[#allocation5 + $0x40] sm:$0xf]
        %v318 = vld [vmem:[#allocation5 + $0x44] sm:$0xf]
        %v319 = vld [vmem:[#allocation5 + $0x48] sm:$0xf]
        %v320 = vld [vmem:[#allocation5 + $0x4c] sm:$0xf]
        %v321 = vld [vmem:[#allocation5 + $0x50] sm:$0xf]
        %v322 = vld [vmem:[#allocation5 + $0x54] sm:$0xf]
        %v323 = vld [vmem:[#allocation5 + $0x58] sm:$0xf]
        %v324 = vld [vmem:[#allocation5 + $0x5c] sm:$0xf]
        %v325 = vld [vmem:[%s2] sm:$0x1]
        %v327 = vlaneseq
        %v328 = vshrl.u32 %v327, 7
        %v329 = vsub.s32 0, %v328
        %v330 = vrot.slane %v325, %v329
        %v334 = vunpack.c.l.b16 %v299
        %v335 = vunpack.c.h.b16 %v299
        %v336 = vunpack.c.l.b16 %v300
        %v337 = vunpack.c.h.b16 %v300
        %v338 = vpack.c.b16 %v336, %v334
        %v339 = vpack.c.b16 %v337, %v335
        %v365 = vunpack.c.l.b16 %v301
        %v366 = vunpack.c.l.b16 %v302
        %v367 = vunpack.c.l.b16 %v303
        %v368 = vunpack.c.l.b16 %v304
        %v369 = vunpack.c.l.b16 %v305
        %v370 = vunpack.c.l.b16 %v306
        %v371 = vunpack.c.l.b16 %v307
        %v372 = vunpack.c.l.b16 %v308
        %v373 = vunpack.c.l.b16 %v309
        %v374 = vunpack.c.l.b16 %v310
        %v375 = vunpack.c.l.b16 %v311
        %v376 = vunpack.c.l.b16 %v312
        %v377 = vunpack.c.l.b16 %v313
        %v378 = vunpack.c.l.b16 %v314
        %v379 = vunpack.c.l.b16 %v315
        %v380 = vunpack.c.l.b16 %v316
        %v381 = vunpack.c.l.b16 %v317
        %v382 = vunpack.c.l.b16 %v318
        %v383 = vunpack.c.l.b16 %v319
        %v384 = vunpack.c.l.b16 %v320
        %v385 = vunpack.c.l.b16 %v321
        %v386 = vunpack.c.l.b16 %v322
        %v387 = vunpack.c.l.b16 %v323
        %v388 = vunpack.c.l.b16 %v324
        %v389 = vpack.c.b16 %v366, %v365
        %v390 = vpack.c.b16 %v368, %v367
        %v391 = vpack.c.b16 %v370, %v369
        %v392 = vpack.c.b16 %v372, %v371
        %v393 = vpack.c.b16 %v374, %v373
        %v394 = vpack.c.b16 %v376, %v375
        %v395 = vpack.c.b16 %v378, %v377
        %v396 = vpack.c.b16 %v380, %v379
        %v397 = vpack.c.b16 %v382, %v381
        %v398 = vpack.c.b16 %v384, %v383
        %v399 = vpack.c.b16 %v386, %v385
        %v400 = vpack.c.b16 %v388, %v387
        %vm413 = vcmask 523264
        %v415 = vsel %vm413, %v339, 0
        %417 = vmatprep.subr.bf16.mxu0 0
        %418 = vmatpush1.bf16.msra.mxu0 %v389
        %419 = vmatprep.subr.bf16.mxu0 0
        %420 = vmatpush1.bf16.msra.mxu0 %v390
        %421 = vmatprep.subr.bf16.mxu0 0
        %422 = vmatpush1.bf16.msra.mxu0 %v391
        %423 = vmatprep.subr.bf16.mxu0 0
        %424 = vmatpush1.bf16.msra.mxu0 %v392
        %425 = vmatprep.subr.bf16.mxu0 0
        %426 = vmatpush1.bf16.msra.mxu0 %v393
        %427 = vmatprep.subr.bf16.mxu0 0
        %428 = vmatpush1.bf16.msra.mxu0 %v394
        %429 = vmatprep.subr.bf16.mxu0 0
        %430 = vmatpush1.bf16.msra.mxu0 %v395
        %431 = vmatprep.subr.bf16.mxu0 0
        %432 = vmatpush1.bf16.msra.mxu0 %v396
        %433 = vmatprep.subr.bf16.mxu0 0
        %434 = vmatpush1.bf16.msra.mxu0 %v397
        %435 = vmatprep.subr.bf16.mxu0 0
        %436 = vmatpush1.bf16.msra.mxu0 %v398
        %437 = vmatprep.subr.bf16.mxu0 0
        %438 = vmatpush1.bf16.msra.mxu0 %v399
        %439 = vmatprep.subr.bf16.mxu0 0
        %440 = vmatpush1.bf16.msra.mxu0 %v400
        %441 = vmatprep.subr.bf16.mxu0 0
        %442 = vmatpush1.bf16.msra.mxu0 0
        %443 = vmatprep.subr.bf16.mxu0 0
        %444 = vmatpush1.bf16.msra.mxu0 0
        %445 = vmatprep.subr.bf16.mxu0 0
        %446 = vmatpush1.bf16.msra.mxu0 0
        %447 = vmatprep.subr.bf16.mxu0 0
        %448 = vmatpush1.bf16.msra.mxu0 0
        %449 = vmatprep.mubr.bf16.mxu0 %v415
        %450 = vmatmul.mubr.bf16.gmra.mrb[0].mxu0 %v338
        %v451 = vpop.f32.mrb[0].mxu0
        %v452 = vadd.f32 %v330, %v451
        %v453 = vpop.f32.mrb[0].mxu0
        %v454 = vpop.f32.mrb[0].mxu0
        %v455 = vadd.f32 %v330, %v454
        %v456 = vpop.f32.mrb[0].mxu0
        %457 = vdwg.mxu0
        %v458 = vmax.f32 %v452, 0.0
        %v459 = vmax.f32 %v455, 0.0
        %v460 = vadd.f32 %v458, %v459
        %v461 = vrot.slane %v460, 4
        %v462 = vadd.f32 %v460, %v461
        %v463 = vrot.slane %v462, 2
        %v464 = vadd.f32 %v462, %v463
        %v465 = vrot.slane %v464, 1
        %v466 = vadd.f32 %v464, %v465
        %v467 = vrcp.pop 16.0
        %v468 = vmul.f32 %v466, %v467
        %v469 = vpack.c.bf16 %v468, %v468
        %v470 = vld [vmem:[#allocation7] sm:$0xf]
        %v471 = vld [vmem:[#allocation7 + $0x4] sm:$0xf]
        %v472 = vld [vmem:[#allocation7 + $0x8] sm:$0xf]
        %v473 = vld [vmem:[#allocation7 + $0xc] sm:$0xf]
        %v474 = vld [vmem:[#allocation7 + $0x10] sm:$0xf]
        %v475 = vld [vmem:[#allocation7 + $0x14] sm:$0xf]
        %v476 = vld [vmem:[#allocation7 + $0x18] sm:$0xf]
        %v477 = vld [vmem:[#allocation7 + $0x1c] sm:$0xf]
        %v478 = vld [vmem:[#allocation7 + $0x20] sm:$0xf]
        %v479 = vld [vmem:[#allocation7 + $0x24] sm:$0xf]
        %v480 = vld [vmem:[#allocation7 + $0x28] sm:$0xf]
        %v481 = vld [vmem:[#allocation7 + $0x2c] sm:$0xf]
        %v482 = vld [vmem:[#allocation7 + $0x30] sm:$0xf]
        %v483 = vld [vmem:[#allocation7 + $0x34] sm:$0xf]
        %v484 = vld [vmem:[#allocation7 + $0x38] sm:$0xf]
        %v485 = vld [vmem:[#allocation7 + $0x3c] sm:$0xf]
        %v486 = vld [vmem:[%s4] sm:$0x1]
        %v503 = vunpack.c.l.b16 %v470
        %v504 = vunpack.c.l.b16 %v471
        %v505 = vunpack.c.l.b16 %v472
        %v506 = vunpack.c.l.b16 %v473
        %v507 = vunpack.c.l.b16 %v474
        %v508 = vunpack.c.l.b16 %v475
        %v509 = vunpack.c.l.b16 %v476
        %v510 = vunpack.c.l.b16 %v477
        %v511 = vunpack.c.l.b16 %v478
        %v512 = vunpack.c.l.b16 %v479
        %v513 = vunpack.c.l.b16 %v480
        %v514 = vunpack.c.l.b16 %v481
        %v515 = vunpack.c.l.b16 %v482
        %v516 = vunpack.c.l.b16 %v483
        %v517 = vunpack.c.l.b16 %v484
        %v518 = vunpack.c.l.b16 %v485
        %v519 = vpack.c.b16 %v504, %v503
        %v520 = vpack.c.b16 %v506, %v505
        %v521 = vpack.c.b16 %v508, %v507
        %v522 = vpack.c.b16 %v510, %v509
        %v523 = vpack.c.b16 %v512, %v511
        %v524 = vpack.c.b16 %v514, %v513
        %v525 = vpack.c.b16 %v516, %v515
        %v526 = vpack.c.b16 %v518, %v517
        %535 = vmatprep.subr.bf16.mxu0 0
        %536 = vmatpush1.bf16.msra.mxu0 %v519
        %537 = vmatprep.subr.bf16.mxu0 0
        %538 = vmatpush1.bf16.msra.mxu0 %v520
        %539 = vmatprep.subr.bf16.mxu0 0
        %540 = vmatpush1.bf16.msra.mxu0 %v521
        %541 = vmatprep.subr.bf16.mxu0 0
        %542 = vmatpush1.bf16.msra.mxu0 %v522
        %543 = vmatprep.subr.bf16.mxu0 0
        %544 = vmatpush1.bf16.msra.mxu0 %v523
        %545 = vmatprep.subr.bf16.mxu0 0
        %546 = vmatpush1.bf16.msra.mxu0 %v524
        %547 = vmatprep.subr.bf16.mxu0 0
        %548 = vmatpush1.bf16.msra.mxu0 %v525
        %549 = vmatprep.subr.bf16.mxu0 0
        %550 = vmatpush1.bf16.msra.mxu0 %v526
        %551 = vmatprep.subr.bf16.mxu0 0
        %552 = vmatpush1.bf16.msra.mxu0 0
        %553 = vmatprep.subr.bf16.mxu0 0
        %554 = vmatpush1.bf16.msra.mxu0 0
        %555 = vmatprep.subr.bf16.mxu0 0
        %556 = vmatpush1.bf16.msra.mxu0 0
        %557 = vmatprep.subr.bf16.mxu0 0
        %558 = vmatpush1.bf16.msra.mxu0 0
        %559 = vmatprep.subr.bf16.mxu0 0
        %560 = vmatpush1.bf16.msra.mxu0 0
        %561 = vmatprep.subr.bf16.mxu0 0
        %562 = vmatpush1.bf16.msra.mxu0 0
        %563 = vmatprep.subr.bf16.mxu0 0
        %564 = vmatpush1.bf16.msra.mxu0 0
        %565 = vmatprep.subr.bf16.mxu0 0
        %566 = vmatpush1.bf16.msra.mxu0 0
        %567 = vmatprep.mubr.bf16.mxu0 0
        %568 = vmatmul.mubr.bf16.gmra.mrb[0].mxu0 %v469
        %v569 = vpop.f32.mrb[0].mxu0
        %v570 = vadd.f32 %v486, %v569
        %v571 = vpop.f32.mrb[0].mxu0
        %v572 = vpop.f32.mrb[0].mxu0
        %v573 = vpop.f32.mrb[0].mxu0
        %574 = vdwg.mxu0
        %v575 = vmul.f32 %v570, %v570
        %vm576 = vcmask 1040384
        %v577 = vsel %vm576, %v575, 0.0
        %578 = vadd.xlane.f32.xlu0 %v577
        %v579 = vpop.xlane.xlu0 %578
        %v580 = vadd.f32 %v579, 1e-12
        %v581 = vrsqrt.pop %v580
        %v582 = vmul.f32 %v570, %v581
        %v583 = vld [vmem:[%s5] sm:$0x1]
        %v584 = vmul.f32 %v582, %v583
        %v585 = vsel %vm576, %v584, 0.0
        %586 = vadd.xlane.f32.xlu0 %v585
        %v587 = vpop.xlane.xlu0 %586
        %v588 = vand.u32 2147483647, %v587
        %v589 = vsub.f32 0.0, %v588
        %v590 = vmul.f32 %v589, 1.442695
        %v591 = vpow.pop %v590
        %v592 = vadd.f32 %v591, 1.0
        %v593 = vrcp.pop %v592
        %v594 = vmul.f32 1.0, %v593
        %vm595 = vcmp.ge.f32.partialorder %v587, 0.0
        %v596 = vsub.f32 1.0, %v594
        %v597 = vsel %vm595, %v594, %v596
        %598 = vst [vmem:[%s297] sm:$0x1] %v597
        %s599 = sand.u32 %s163, 1
        %s600 = scalar_lea.sflag [#allocation4], %s599
        %s601 = sand.u32 %s163, 1
        %s602 = scalar_lea.vmem [#allocation8], %s601
        // Predicated region
        $region57: #{tpu_custom_call.1} parent=43 // pred_check
          %p603 = pneg %p173
        $region58: #{tpu_custom_call.1} parent=43 // pred_check_branch
          %605 = sbr.rel (%p603) target = $region60
        $region59: #{tpu_custom_call.1} parent=43 // pred_region
          %s607 = ssub.s32 16, 16
          %608 = vsyncadd %s600, %s607
          %s609 = smul.addr %s24, 16
          %s610 = scalar_lea.hbm %s6, %s609
          %s612 = sshll.u32 %s602, 4
          %s613 = int_to_ptr.vmem [resolvable:$true] %s612
          %615 = dma.vmem_to_hbm [thread:$0]  %s613, 16, %s610, %s600
        $region60: #{tpu_custom_call.1} parent=43 // pred_fallthru
          _
      $region44: #{tpu_custom_call.1} parent=5 // pred_fallthru
        _
      %p616 = scmp.le.s32.totalorder 2, %s19
      // Predicated region
      $region61: #{tpu_custom_call.1} parent=5 // pred_check
        %p617 = pneg %p616
      $region62: #{tpu_custom_call.1} parent=5 // pred_check_branch
        %619 = sbr.rel (%p617) target = $region64
      $region63: #{tpu_custom_call.1} parent=5 // pred_region
        %s620 = ssub.s32 %s19, 2
        // Predicated region
        $region65: #{tpu_custom_call.1} parent=63 // pred_check
          %p621 = pneg %p179
        $region66: #{tpu_custom_call.1} parent=63 // pred_check_branch
          %623 = sbr.rel (%p621) target = $region68
        $region67: #{tpu_custom_call.1} parent=63 // pred_region
          %s624 = sand.u32 %s164, 1
          %s625 = scalar_lea.sflag [#allocation4], %s624
          %s626 = sand.u32 %s164, 1
          %s627 = scalar_lea.vmem [#allocation8], %s626
          %628 = dma.done %s625, 16
        $region68: #{tpu_custom_call.1} parent=63 // pred_fallthru
          _
      $region64: #{tpu_custom_call.1} parent=5 // pred_fallthru
        _
    $region6: #{tpu_custom_call.1} parent=1 // loop_footer
      %s23 = sadd.s32 1, %s19
    $region7: #{tpu_custom_call.1} parent=1 // loop_footer_branch
      %18 = sbr.rel target = $region3
    $region8: #{tpu_custom_call.1} parent=1 // loop_exit
      _
    %629 = vsyncpa [#allocation3], 1
    %s630 = scalar_lea.sflag [#allocation3], 1
    %631 = vsyncpa %s630, 1
    %632 = vsyncpa [#allocation6], 1
    %633 = vsyncpa [#allocation4], 1
    %s634 = scalar_lea.sflag [#allocation4], 1
    %635 = vsyncpa %s634, 1

</llo_original>
